<compile_context>
chip_gen: v5e
topology: v5e:2x2
jax: 0.10.0
libtpu: 0.0.40
codegen_flags: <defaults>
</compile_context>

<pallas_src>
import math

import jax
import jax.numpy as jnp
from jax.experimental import pallas as pl
from jax.experimental.pallas import tpu as pltpu


def _round_up(x, m):
    return ((x + m - 1) // m) * m


# ----------------------------------------------------------------------------
# Kernel 1: row-tiled matmul  y = x @ w + bias  (+ residual), f32 accumulation
# ----------------------------------------------------------------------------
def _linear_kernel(x_ref, w_ref, b_ref, o_ref):
    y = jnp.dot(x_ref[...], w_ref[...], preferred_element_type=jnp.float32)
    y = y + b_ref[...]
    o_ref[...] = y.astype(o_ref.dtype)


def _linear_res_kernel(x_ref, w_ref, b_ref, r_ref, o_ref):
    y = jnp.dot(x_ref[...], w_ref[...], preferred_element_type=jnp.float32)
    y = y + b_ref[...] + r_ref[...]
    o_ref[...] = y.astype(o_ref.dtype)


def linear(x, w, bias=None, residual=None, tile_m=256):
    """y = x @ w (+ bias) (+ residual); x:(N,Cin), w:(Cin,Cout)."""
    n, cin = x.shape
    cout = w.shape[1]
    if bias is None:
        bias = jnp.zeros((cout,), jnp.float32)
    b2 = bias.reshape(1, cout).astype(jnp.float32)

    # Row tile: multiple of 8 sublanes, capped so (TM,Cin)+(TM,Cout) blocks
    # (double-buffered) stay well under the smallest scoped-VMEM budget.
    tm = min(tile_m, _round_up(n, 8))
    n_pad = _round_up(n, tm)
    xp = x if n_pad == n else jnp.pad(x, ((0, n_pad - n), (0, 0)))

    x_spec = pl.BlockSpec((tm, cin), lambda i: (i, 0))
    w_spec = pl.BlockSpec((cin, cout), lambda i: (0, 0))
    b_spec = pl.BlockSpec((1, cout), lambda i: (0, 0))
    o_spec = pl.BlockSpec((tm, cout), lambda i: (i, 0))
    common = dict(
        out_shape=jax.ShapeDtypeStruct((n_pad, cout), jnp.float32),
        grid=(n_pad // tm,),
        compiler_params=pltpu.CompilerParams(dimension_semantics=("parallel",)),
    )

    if residual is None:
        out = pl.pallas_call(
            _linear_kernel,
            in_specs=[x_spec, w_spec, b_spec],
            out_specs=o_spec,
            **common,
        )(xp, w, b2)
    else:
        rp = residual if n_pad == n else jnp.pad(residual, ((0, n_pad - n), (0, 0)))
        r_spec = pl.BlockSpec((tm, cout), lambda i: (i, 0))
        out = pl.pallas_call(
            _linear_res_kernel,
            in_specs=[x_spec, w_spec, b_spec, r_spec],
            out_specs=o_spec,
            **common,
        )(xp, w, b2, rp)

    return out[:n] if n_pad != n else out


# ----------------------------------------------------------------------------
# Kernel 2: multi-head attention core (scores -> softmax -> @V), per batch elt
# ----------------------------------------------------------------------------
def _mha_kernel(q_ref, k_ref, v_ref, o_ref):
    q = q_ref[0]                       # (H, L, Dh)
    k = k_ref[0]
    v = v_ref[0]
    dh = q.shape[-1]
    scale = 1.0 / math.sqrt(dh)        # static Python float, no captured array

    s = jnp.einsum("hqd,hkd->hqk", q, k,
                   preferred_element_type=jnp.float32) * scale
    m = jnp.max(s, axis=-1, keepdims=True)
    p = jnp.exp(s - m)
    denom = jnp.sum(p, axis=-1, keepdims=True)
    p = p / denom
    o = jnp.einsum("hqk,hkd->hqd", p, v, preferred_element_type=jnp.float32)
    o_ref[0] = o.astype(o_ref.dtype)


def mha_attention(q, k, v):
    """q/k/v: (B, H, L, Dh) -> (B, H, L, Dh)."""
    b, h, l, dh = q.shape
    spec = pl.BlockSpec((1, h, l, dh), lambda i: (i, 0, 0, 0))
    return pl.pallas_call(
        _mha_kernel,
        out_shape=jax.ShapeDtypeStruct((b, h, l, dh), jnp.float32),
        grid=(b,),
        in_specs=[spec, spec, spec],
        out_specs=spec,
        compiler_params=pltpu.CompilerParams(dimension_semantics=("parallel",)),
    )(q, k, v)


# ----------------------------------------------------------------------------
# TransformerLayer: parameters + forward wrapper (glue only)
# ----------------------------------------------------------------------------
def init_transformer_layer_params(key, c, num_heads):
    """Weights stored as (Cin, Cout), i.e. the transpose of PyTorch's (out, in)."""
    ks = jax.random.split(key, 13)
    bound = 1.0 / math.sqrt(c)

    def u(k, shape):
        return jax.random.uniform(k, shape, jnp.float32, -bound, bound)

    return dict(
        num_heads=num_heads,
        # bias-free Linears of the module
        wq=u(ks[0], (c, c)), wk=u(ks[1], (c, c)), wv=u(ks[2], (c, c)),
        w1=u(ks[3], (c, c)), w2=u(ks[4], (c, c)),
        # nn.MultiheadAttention in_proj (split into q/k/v chunks) + bias
        wiq=u(ks[5], (c, c)), wik=u(ks[6], (c, c)), wiv=u(ks[7], (c, c)),
        biq=u(ks[8], (c,)), bik=u(ks[9], (c,)), biv=u(ks[10], (c,)),
        # nn.MultiheadAttention out_proj + bias
        wo=u(ks[11], (c, c)), bo=u(ks[12], (c,)),
    )


def transformer_layer_forward(x, params):
    """x: (L, B, C) -- PyTorch nn.MultiheadAttention layout (seq, batch, embed)."""
    L, B, C = x.shape
    H = params["num_heads"]
    Dh = C // H
    xf = x.reshape(L * B, C).astype(jnp.float32)

    # Fold the module's q/k/v Linear into the MHA in_proj (exact rewrite):
    #   (x @ Wq) @ Wiq == x @ (Wq @ Wiq)   with weights stored (Cin, Cout).
    q = linear(xf, params["wq"] @ params["wiq"], params["biq"])
    k = linear(xf, params["wk"] @ params["wik"], params["bik"])
    v = linear(xf, params["wv"] @ params["wiv"], params["biv"])

    def to_heads(t):  # (L*B, C) -> (B, H, L, Dh)
        return jnp.transpose(t.reshape(L, B, H, Dh), (1, 2, 0, 3))

    o = mha_attention(to_heads(q), to_heads(k), to_heads(v))     # (B,H,L,Dh)
    o = jnp.transpose(o, (2, 0, 1, 3)).reshape(L * B, C)         # back to (L*B,C)

    # out_proj + first residual, fused into the matmul epilogue
    x1 = linear(o, params["wo"], params["bo"], residual=xf)

    # feed-forward: fc2(fc1(x)) + x, second residual fused into fc2
    h = linear(x1, params["w1"])
    x2 = linear(h, params["w2"], residual=x1)

    return x2.reshape(L, B, C)


# ----------------------------------------------------------------------------
# Pure-JAX reference mirroring the PyTorch forward literally (correctness check)
# ----------------------------------------------------------------------------
def transformer_layer_reference(x, params):
    L, B, C = x.shape
    H = params["num_heads"]
    Dh = C // H

    q = x @ params["wq"]
    k = x @ params["wk"]
    v = x @ params["wv"]
    qp = q @ params["wiq"] + params["biq"]
    kp = k @ params["wik"] + params["bik"]
    vp = v @ params["wiv"] + params["biv"]

    def to_heads(t):
        return jnp.transpose(t.reshape(L, B, H, Dh), (1, 2, 0, 3))

    qh, kh, vh = to_heads(qp), to_heads(kp), to_heads(vp)
    s = jnp.einsum("bhqd,bhkd->bhqk", qh, kh) / jnp.sqrt(jnp.float32(Dh))
    p = jax.nn.softmax(s, axis=-1)
    o = jnp.einsum("bhqk,bhkd->bhqd", p, vh)
    o = jnp.transpose(o, (2, 0, 1, 3)).reshape(L, B, C)
    o = o @ params["wo"] + params["bo"]
    x1 = o + x
    x2 = (x1 @ params["w1"]) @ params["w2"] + x1
    return x2


if __name__ == "__main__":
    key = jax.random.PRNGKey(0)
    k_x, k_p = jax.random.split(key)

    # Small but TPU-friendly shapes: seq=16, batch=2, embed=128 (lane-dense), 4 heads.
    L, B, C, H = 16, 2, 128, 4
    x = jax.random.normal(k_x, (L, B, C), jnp.float32)
    params = init_transformer_layer_params(k_p, C, H)

    out = jax.block_until_ready(transformer_layer_forward(x, params))
    ref = jax.block_until_ready(transformer_layer_reference(x, params))

    assert out.shape == (L, B, C), out.shape
    max_err = float(jnp.max(jnp.abs(out - ref)))
    assert jnp.allclose(out, ref, atol=2e-4, rtol=2e-4), max_err

    print("KERNEL_OK")
</pallas_src>

<mosaic_0001>
module attributes {stable_mosaic.version = 11 : i64} {
  func.func @_linear_kernel(%arg0: i32, %arg1: memref<32x128xf32, #tpu.memory_space<vmem>>, %arg2: memref<128x128xf32, #tpu.memory_space<vmem>>, %arg3: memref<1x128xf32, #tpu.memory_space<vmem>>, %arg4: memref<32x128xf32, #tpu.memory_space<vmem>>) attributes {dimension_semantics = [#tpu.dimension_semantics<parallel>], iteration_bounds = array<i64: 1>, scalar_prefetch = 0 : i64, scratch_operands = 0 : i64, tpu.core_type = #tpu.core_type<tc>, window_params = [{transform_indices = @transform_0, window_bounds = array<i64: 32, 128>}, {pipeline_mode = #tpu.pipeline_mode<synchronous>, transform_indices = @transform_1, window_bounds = array<i64: 128, 128>}, {pipeline_mode = #tpu.pipeline_mode<synchronous>, transform_indices = @transform_2, window_bounds = array<i64: 1, 128>}, {transform_indices = @transform_3, window_bounds = array<i64: 32, 128>}]} {
    %c0 = arith.constant 0 : index
    %c0_0 = arith.constant 0 : index
    %0 = vector.load %arg1[%c0, %c0_0] : memref<32x128xf32, #tpu.memory_space<vmem>>, vector<32x128xf32>
    %c0_1 = arith.constant 0 : index
    %c0_2 = arith.constant 0 : index
    %1 = vector.load %arg2[%c0_1, %c0_2] : memref<128x128xf32, #tpu.memory_space<vmem>>, vector<128x128xf32>
    %cst = arith.constant dense<0.000000e+00> : vector<32x128xf32>
    %2 = tpu.matmul %0, %1, %cst {dimension_numbers = #tpu.dot_dimension_numbers<[1], [0], [0], [1], [0, 0, 1, 1], [], []>} : vector<32x128xf32>, vector<128x128xf32>, vector<32x128xf32> -> vector<32x128xf32>
    %c0_3 = arith.constant 0 : index
    %c0_4 = arith.constant 0 : index
    %3 = vector.load %arg3[%c0_3, %c0_4] : memref<1x128xf32, #tpu.memory_space<vmem>>, vector<1x128xf32>
    %4 = vector.broadcast %3 : vector<1x128xf32> to vector<32x128xf32>
    %5 = arith.addf %2, %4 : vector<32x128xf32>
    %c0_5 = arith.constant 0 : index
    %c0_6 = arith.constant 0 : index
    %6 = vector.load %arg4[%c0_5, %c0_6] : memref<32x128xf32, #tpu.memory_space<vmem>>, vector<32x128xf32>
    tpu.vector_store %arg4[%c0_5, %c0_6], %5 {strides = array<i32>} : memref<32x128xf32, #tpu.memory_space<vmem>>, vector<32x128xf32>,
    return
  }
  func.func @transform_0(%arg0: i32) -> (i32, i32) {
    %c0_i32 = arith.constant 0 : i32
    %c0_i32_0 = arith.constant 0 : i32
    return %arg0, %c0_i32 : i32, i32
  }
  func.func @transform_1(%arg0: i32) -> (i32, i32) {
    %c0_i32 = arith.constant 0 : i32
    %c0_i32_0 = arith.constant 0 : i32
    %c0_i32_1 = arith.constant 0 : i32
    return %c0_i32, %c0_i32_0 : i32, i32
  }
  func.func @transform_2(%arg0: i32) -> (i32, i32) {
    %c0_i32 = arith.constant 0 : i32
    %c0_i32_0 = arith.constant 0 : i32
    %c0_i32_1 = arith.constant 0 : i32
    return %c0_i32, %c0_i32_0 : i32, i32
  }
  func.func @transform_3(%arg0: i32) -> (i32, i32) {
    %c0_i32 = arith.constant 0 : i32
    %c0_i32_0 = arith.constant 0 : i32
    return %arg0, %c0_i32 : i32, i32
  }
}

</mosaic_0001>

<llo_original>
// kernel: tpu_custom_call.1
$region0: #{tpu_custom_call.1}
  #allocation0 [shape = 'u32[]', space=smem, size = 0x4, offset = 0x4, fixed_abs, tag = 'smem constant byte address 0x4 - core index']
  #allocation1 [shape = 'u32[72,128]{1,0:T(1,128)}', space=vmem, size = 0x9000, scoped, tag = 'internal scratch']
  %s0 = inlined_call_operand.hbm [shape: f32[32,128], index: 0, kind: input, shape index: {}]
  %s1 = inlined_call_operand.hbm [shape: f32[128,128], index: 1, kind: input, shape index: {}]
  %s2 = inlined_call_operand.vmem [shape: f32[1,128], index: 2, kind: input, shape index: {}]
  %s3 = inlined_call_operand.hbm [shape: f32[32,128], index: 3, kind: output, shape index: {}]
  %s4 = sld [smem:[#allocation0]]
  $region30: #{tpu_custom_call.1} parent=0
    _
  %s6 = ssub.s32 1, %s4
  %s7 = scalar_select 0, %s6, %s4
  $region1: #{tpu_custom_call.1} parent=0
    #allocation2 [shape = 'u8[16384]{0}', space=vmem, size = 0x4000, scoped, tag = 'input window, operand 0, single buffered']
    #allocation3 [shape = 's32[1]{0}', space=sflag, size = 0x4, scoped, tag = 'scoped memory for tpu_custom_call.1']
    #allocation4 [shape = 's32[1]{0}', space=sflag, size = 0x4, scoped, tag = 'scoped memory for tpu_custom_call.1']
    #allocation5 [shape = 'u8[65536]{0}', space=vmem, size = 0x10000, scoped, tag = 'input window, operand 1, single buffered']
    #allocation6 [shape = 's32[1]{0}', space=sflag, size = 0x4, scoped, tag = 'scoped memory for tpu_custom_call.1']
    #allocation7 [shape = 'u8[16384]{0}', space=vmem, size = 0x4000, scoped, tag = 'output window, operand 0, single buffered']
    %8 = vsyncpa [#allocation3], 0
    %9 = vsyncpa [#allocation6], 0
    %10 = vsyncpa [#allocation4], 0
    // Predicated region
    $region2: #{tpu_custom_call.1} parent=1 // pred_check
      _
    $region3: #{tpu_custom_call.1} parent=1 // pred_check_branch
      %12 = sbr.rel (0) target = $region5
    $region4: #{tpu_custom_call.1} parent=1 // pred_region
      %14 = vsyncadd [#allocation3], 0
      %s15 = sshll.u32 %s0, 4
      %s16 = int_to_ptr.hbm [resolvable:$true] %s15
      %s17 = sshll.u32 [#allocation2], 4
      %s18 = int_to_ptr.vmem [resolvable:$true] %s17
      %23 = dma.hbm_to_vmem [thread:$0]  %s16, 512, %s18, [#allocation3], 128, 128, 8
    $region5: #{tpu_custom_call.1} parent=1 // pred_fallthru
      _
    // Predicated region
    $region6: #{tpu_custom_call.1} parent=1 // pred_check
      _
    $region7: #{tpu_custom_call.1} parent=1 // pred_check_branch
      %25 = sbr.rel (0) target = $region9
    $region8: #{tpu_custom_call.1} parent=1 // pred_region
      %27 = vsyncadd [#allocation6], 0
      %s28 = sshll.u32 %s1, 4
      %s29 = int_to_ptr.hbm [resolvable:$true] %s28
      %s30 = sshll.u32 [#allocation5], 4
      %s31 = int_to_ptr.vmem [resolvable:$true] %s30
      %36 = dma.hbm_to_vmem [thread:$0]  %s29, 2048, %s31, [#allocation6], 128, 128, 8
    $region9: #{tpu_custom_call.1} parent=1 // pred_fallthru
      _
    // Predicated region
    $region10: #{tpu_custom_call.1} parent=1 // pred_check
      _
    $region11: #{tpu_custom_call.1} parent=1 // pred_check_branch
      %38 = sbr.rel (0) target = $region13
    $region12: #{tpu_custom_call.1} parent=1 // pred_region
      _
    $region13: #{tpu_custom_call.1} parent=1 // pred_fallthru
      _
    // Predicated region
    $region14: #{tpu_custom_call.1} parent=1 // pred_check
      _
    $region15: #{tpu_custom_call.1} parent=1 // pred_check_branch
      %40 = sbr.rel (0) target = $region17
    $region16: #{tpu_custom_call.1} parent=1 // pred_region
      %42 = dma.done [#allocation3], 512
    $region17: #{tpu_custom_call.1} parent=1 // pred_fallthru
      _
    // Predicated region
    $region18: #{tpu_custom_call.1} parent=1 // pred_check
      _
    $region19: #{tpu_custom_call.1} parent=1 // pred_check_branch
      %44 = sbr.rel (0) target = $region21
    $region20: #{tpu_custom_call.1} parent=1 // pred_region
      %46 = dma.done [#allocation6], 2048
    $region21: #{tpu_custom_call.1} parent=1 // pred_fallthru
      _
    %v47 = vld [vmem:[#allocation2] sm:$0xff]
    %v48 = vld [vmem:[#allocation2 + $0x8] sm:$0xff]
    %v49 = vld [vmem:[#allocation2 + $0x10] sm:$0xff]
    %v50 = vld [vmem:[#allocation2 + $0x18] sm:$0xff]
    %v51 = vld [vmem:[#allocation5] sm:$0xff]
    %v52 = vld [vmem:[#allocation5 + $0x8] sm:$0xff]
    %v53 = vld [vmem:[#allocation5 + $0x10] sm:$0xff]
    %v54 = vld [vmem:[#allocation5 + $0x18] sm:$0xff]
    %v55 = vld [vmem:[#allocation5 + $0x20] sm:$0xff]
    %v56 = vld [vmem:[#allocation5 + $0x28] sm:$0xff]
    %v57 = vld [vmem:[#allocation5 + $0x30] sm:$0xff]
    %v58 = vld [vmem:[#allocation5 + $0x38] sm:$0xff]
    %v59 = vld [vmem:[#allocation5 + $0x40] sm:$0xff]
    %v60 = vld [vmem:[#allocation5 + $0x48] sm:$0xff]
    %v61 = vld [vmem:[#allocation5 + $0x50] sm:$0xff]
    %v62 = vld [vmem:[#allocation5 + $0x58] sm:$0xff]
    %v63 = vld [vmem:[#allocation5 + $0x60] sm:$0xff]
    %v64 = vld [vmem:[#allocation5 + $0x68] sm:$0xff]
    %v65 = vld [vmem:[#allocation5 + $0x70] sm:$0xff]
    %v66 = vld [vmem:[#allocation5 + $0x78] sm:$0xff]
    %v67 = vld [vmem:[%s2] sm:$0x1]
    %v69 = vperm.slane %v67, 0
    %71 = vmatpush.msra.mxu0 %v66
    %72 = vmatpush.msra.mxu0 %v65
    %73 = vmatpush.msra.mxu0 %v64
    %74 = vmatpush.msra.mxu0 %v63
    %75 = vmatpush.msra.mxu0 %v62
    %76 = vmatpush.msra.mxu0 %v61
    %77 = vmatpush.msra.mxu0 %v60
    %78 = vmatpush.msra.mxu0 %v59
    %79 = vmatpush.msra.mxu0 %v58
    %80 = vmatpush.msra.mxu0 %v57
    %81 = vmatpush.msra.mxu0 %v56
    %82 = vmatpush.msra.mxu0 %v55
    %83 = vmatpush.msra.mxu0 %v54
    %84 = vmatpush.msra.mxu0 %v53
    %85 = vmatpush.msra.mxu0 %v52
    %86 = vmatpush.msra.mxu0 %v51
    %87 = vmatmul.f32.gmra.mxu0 %v47
    %v88 = vpop.f32.mrf.mxu0
    %v89 = vadd.f32 %v69, %v88
    %90 = vmatmul.f32.gmra.mxu0 %v48
    %v91 = vpop.f32.mrf.mxu0
    %v92 = vadd.f32 %v69, %v91
    %93 = vmatmul.f32.gmra.mxu0 %v49
    %v94 = vpop.f32.mrf.mxu0
    %v95 = vadd.f32 %v69, %v94
    %96 = vmatmul.f32.gmra.mxu0 %v50
    %v97 = vpop.f32.mrf.mxu0
    %v98 = vadd.f32 %v69, %v97
    %99 = vdwg.mxu0
    %100 = vst [vmem:[#allocation7] sm:$0xff] %v89
    %101 = vst [vmem:[#allocation7 + $0x8] sm:$0xff] %v92
    %102 = vst [vmem:[#allocation7 + $0x10] sm:$0xff] %v95
    %103 = vst [vmem:[#allocation7 + $0x18] sm:$0xff] %v98
    // Predicated region
    $region22: #{tpu_custom_call.1} parent=1 // pred_check
      _
    $region23: #{tpu_custom_call.1} parent=1 // pred_check_branch
      %105 = sbr.rel (0) target = $region25
    $region24: #{tpu_custom_call.1} parent=1 // pred_region
      %107 = vsyncadd [#allocation4], 0
      %s108 = sshll.u32 [#allocation7], 4
      %s109 = int_to_ptr.vmem [resolvable:$true] %s108
      %s110 = sshll.u32 %s3, 4
      %s111 = int_to_ptr.hbm [resolvable:$true] %s110
      %116 = dma.vmem_to_hbm [thread:$0]  %s109, 512, %s111, [#allocation4], 128, 128, 8
    $region25: #{tpu_custom_call.1} parent=1 // pred_fallthru
      _
    // Predicated region
    $region26: #{tpu_custom_call.1} parent=1 // pred_check
      _
    $region27: #{tpu_custom_call.1} parent=1 // pred_check_branch
      %118 = sbr.rel (0) target = $region29
    $region28: #{tpu_custom_call.1} parent=1 // pred_region
      %120 = dma.done [#allocation4], 512
    $region29: #{tpu_custom_call.1} parent=1 // pred_fallthru
      _
    %121 = vsyncpa [#allocation3], 1
    %122 = vsyncpa [#allocation6], 1
    %123 = vsyncpa [#allocation4], 1

</llo_original>
